<compile_context>
chip_gen: v7x
topology: tpu7x:2x2x1
jax: 0.10.0
libtpu: 0.0.40
codegen_flags: <defaults>
</compile_context>

<pallas_src>
import functools

import jax
import jax.numpy as jnp
from jax.experimental import pallas as pl
from jax.experimental.pallas import tpu as pltpu


def winenet_kernel(x_ref, w1_ref, b1_ref, w2_ref, b2_ref, out_ref):
    # fc1, feature-major: (H, 13) . (TB, 13)^T -> (H, TB), f32 MXU accumulation.
    # Contracting the last dim of both operands keeps the batch on the lane axis.
    hT = jax.lax.dot_general(
        w1_ref[...], x_ref[...],
        dimension_numbers=(((1,), (1,)), ((), ())),
        preferred_element_type=jnp.float32,
    )
    hT = hT + b1_ref[...]                      # (H, 1) broadcast along lanes
    # Sigmoid: exp + reciprocal route to the EUP slot; hT is fully lane-dense.
    # (Optional micro-opt once EUP-bound: pl.reciprocal(1 + exp(-hT), approx=True).)
    hT = jax.nn.sigmoid(hT)
    # fc2, feature-major: (3, H) @ (H, TB) -> (3, TB).
    oT = jnp.dot(w2_ref[...], hT, preferred_element_type=jnp.float32)
    # Lane-dense store: out block last dim is TB (large multiple of 128).
    out_ref[...] = (oT + b2_ref[...]).astype(out_ref.dtype)


def _round_up(v, m):
    return ((v + m - 1) // m) * m


@functools.partial(jax.jit, static_argnames=("block_b", "out_batch_major"))
def winenet_forward(x, w1, b1, w2, b2, *, block_b=8192, out_batch_major=True):
    """Forward pass (fc1 -> sigmoid -> fc2).

    Weights are PyTorch-layout: w1 (n_neur, 13), b1 (n_neur, 1),
    w2 (3, n_neur), b2 (3, 1).
    """
    B, F = x.shape
    out_dim = w2.shape[0]

    # Batch tile: as large as block_b, but keep >= 2 grid steps when B allows
    # (so v7x's two TensorCores both get work), and a multiple of 128 so the
    # (out_dim, tb) output block is lane-dense.  Tiny B -> one full-extent block.
    if B >= 128:
        tb = min(_round_up(block_b, 128),
                 max(128, _round_up(pl.cdiv(B, 2), 128)))
    else:
        tb = B
    grid = (pl.cdiv(B, tb),)

    out_t = pl.pallas_call(
        winenet_kernel,
        out_shape=jax.ShapeDtypeStruct((out_dim, B), jnp.float32),
        grid=grid,
        in_specs=[
            # x tiled over the batch axis -> Pallas double-buffers HBM reads.
            pl.BlockSpec((tb, F), lambda i: (i, 0)),
            # Weights/biases: constant index_map -> resident in VMEM all steps.
            pl.BlockSpec(w1.shape, lambda i: (0, 0)),
            pl.BlockSpec(b1.shape, lambda i: (0, 0)),
            pl.BlockSpec(w2.shape, lambda i: (0, 0)),
            pl.BlockSpec(b2.shape, lambda i: (0, 0)),
        ],
        # Feature-major output: last dim tb is lane-dense; the partial final
        # block (B % tb != 0) is masked by Pallas, so no pad / slice is needed.
        out_specs=pl.BlockSpec((out_dim, tb), lambda i: (0, i)),
        compiler_params=pltpu.CompilerParams(
            # Batch steps are independent -> let v7x shard them over its 2 TCs.
            dimension_semantics=("parallel",),
            # Actual need (~12 MiB at tb=8192) + headroom; never the full
            # 64 MiB physical VMEM of a v7x core.
            vmem_limit_bytes=32 * 1024 * 1024,
        ),
    )(x, w1, b1, w2, b2)

    # (3, B) -> (B, 3) for WineNet.forward parity; serving callers that can
    # consume the lane-dense feature-major output should pass
    # out_batch_major=False and skip this transpose.
    return out_t.T if out_batch_major else out_t


def init_params(key, n_neur, in_dim=13, out_dim=3):
    """PyTorch-layout params with Linear default init (uniform +/- 1/sqrt(fan_in))."""
    k1, k2, k3, k4 = jax.random.split(key, 4)
    bound1 = 1.0 / jnp.sqrt(in_dim)
    bound2 = 1.0 / jnp.sqrt(n_neur)
    w1 = jax.random.uniform(k1, (n_neur, in_dim), jnp.float32, -bound1, bound1)
    b1 = jax.random.uniform(k2, (n_neur, 1), jnp.float32, -bound1, bound1)
    w2 = jax.random.uniform(k3, (out_dim, n_neur), jnp.float32, -bound2, bound2)
    b2 = jax.random.uniform(k4, (out_dim, 1), jnp.float32, -bound2, bound2)
    return w1, b1, w2, b2


if __name__ == "__main__":
    key = jax.random.PRNGKey(0)
    n_neur = 32
    batch = 8

    kx, kp = jax.random.split(key)
    x = jax.random.normal(kx, (batch, 13), jnp.float32)
    w1, b1, w2, b2 = init_params(kp, n_neur)

    def reference(xv):
        # Plain-JAX reference of WineNet.forward (no softmax).
        return jax.nn.sigmoid(xv @ w1.T + b1.T) @ w2.T + b2.T

    # Small-batch path (single full-extent block).
    out = jax.block_until_ready(winenet_forward(x, w1, b1, w2, b2))
    ref = reference(x)
    assert out.shape == (batch, 3)
    assert jnp.allclose(out, ref, atol=1e-5, rtol=1e-5)

    # Larger batch exercises the tiled path: 2 grid steps with a masked partial
    # final block (777 % 512 != 0) -- verifies cdiv-grid masking on device.
    kx2, _ = jax.random.split(kx)
    x_big = jax.random.normal(kx2, (777, 13), jnp.float32)
    out_big = jax.block_until_ready(winenet_forward(x_big, w1, b1, w2, b2))
    ref_big = reference(x_big)
    assert out_big.shape == (777, 3)
    assert jnp.allclose(out_big, ref_big, atol=1e-5, rtol=1e-5)

    # Feature-major (lane-dense) output path intended for serving.
    out_fm = jax.block_until_ready(
        winenet_forward(x_big, w1, b1, w2, b2, out_batch_major=False))
    assert out_fm.shape == (3, 777)
    assert jnp.allclose(out_fm.T, ref_big, atol=1e-5, rtol=1e-5)

    print("KERNEL_OK")
</pallas_src>

<mosaic_0001>
module attributes {stable_mosaic.version = 11 : i64} {
  func.func @winenet_kernel(%arg0: i32, %arg1: memref<8x13xf32, #tpu.memory_space<vmem>>, %arg2: memref<32x13xf32, #tpu.memory_space<vmem>>, %arg3: memref<32x1xf32, #tpu.memory_space<vmem>>, %arg4: memref<3x32xf32, #tpu.memory_space<vmem>>, %arg5: memref<3x1xf32, #tpu.memory_space<vmem>>, %arg6: memref<3x8xf32, #tpu.memory_space<vmem>>) attributes {dimension_semantics = [#tpu.dimension_semantics<parallel>], iteration_bounds = array<i64: 1>, scalar_prefetch = 0 : i64, scratch_operands = 0 : i64, tpu.core_type = #tpu.core_type<tc>, window_params = [{transform_indices = @transform_0, window_bounds = array<i64: 8, 13>}, {pipeline_mode = #tpu.pipeline_mode<synchronous>, transform_indices = @transform_1, window_bounds = array<i64: 32, 13>}, {pipeline_mode = #tpu.pipeline_mode<synchronous>, transform_indices = @transform_2, window_bounds = array<i64: 32, 1>}, {pipeline_mode = #tpu.pipeline_mode<synchronous>, transform_indices = @transform_3, window_bounds = array<i64: 3, 32>}, {pipeline_mode = #tpu.pipeline_mode<synchronous>, transform_indices = @transform_4, window_bounds = array<i64: 3, 1>}, {transform_indices = @transform_5, window_bounds = array<i64: 3, 8>}]} {
    %c0 = arith.constant 0 : index
    %c0_0 = arith.constant 0 : index
    %0 = vector.load %arg2[%c0, %c0_0] : memref<32x13xf32, #tpu.memory_space<vmem>>, vector<32x13xf32>
    %c0_1 = arith.constant 0 : index
    %c0_2 = arith.constant 0 : index
    %1 = vector.load %arg1[%c0_1, %c0_2] : memref<8x13xf32, #tpu.memory_space<vmem>>, vector<8x13xf32>
    %cst = arith.constant dense<0.000000e+00> : vector<32x8xf32>
    %2 = tpu.matmul %0, %1, %cst {dimension_numbers = #tpu.dot_dimension_numbers<[1], [1], [0], [0], [0, 0, 1, 0], [], []>} : vector<32x13xf32>, vector<8x13xf32>, vector<32x8xf32> -> vector<32x8xf32>
    %c0_3 = arith.constant 0 : index
    %c0_4 = arith.constant 0 : index
    %3 = vector.load %arg3[%c0_3, %c0_4] : memref<32x1xf32, #tpu.memory_space<vmem>>, vector<32x1xf32>
    %4 = vector.broadcast %3 : vector<32x1xf32> to vector<32x8xf32>
    %5 = arith.addf %2, %4 : vector<32x8xf32>
    %6 = arith.negf %5 : vector<32x8xf32>
    %7 = math.exp %6 : vector<32x8xf32>
    %cst_5 = arith.constant 1.000000e+00 : f32
    %8 = vector.broadcast %cst_5 : f32 to vector<32x8xf32>
    %9 = arith.addf %8, %7 : vector<32x8xf32>
    %10 = arith.divf %8, %9 : vector<32x8xf32>
    %c0_6 = arith.constant 0 : index
    %c0_7 = arith.constant 0 : index
    %11 = vector.load %arg4[%c0_6, %c0_7] : memref<3x32xf32, #tpu.memory_space<vmem>>, vector<3x32xf32>
    %cst_8 = arith.constant dense<0.000000e+00> : vector<3x8xf32>
    %12 = tpu.matmul %11, %10, %cst_8 {dimension_numbers = #tpu.dot_dimension_numbers<[1], [0], [0], [1], [0, 0, 1, 1], [], []>} : vector<3x32xf32>, vector<32x8xf32>, vector<3x8xf32> -> vector<3x8xf32>
    %c0_9 = arith.constant 0 : index
    %c0_10 = arith.constant 0 : index
    %13 = vector.load %arg5[%c0_9, %c0_10] : memref<3x1xf32, #tpu.memory_space<vmem>>, vector<3x1xf32>
    %14 = vector.broadcast %13 : vector<3x1xf32> to vector<3x8xf32>
    %15 = arith.addf %12, %14 : vector<3x8xf32>
    %c0_11 = arith.constant 0 : index
    %c0_12 = arith.constant 0 : index
    %16 = vector.load %arg6[%c0_11, %c0_12] : memref<3x8xf32, #tpu.memory_space<vmem>>, vector<3x8xf32>
    tpu.vector_store %arg6[%c0_11, %c0_12], %15 {strides = array<i32>} : memref<3x8xf32, #tpu.memory_space<vmem>>, vector<3x8xf32>,
    return
  }
  func.func @transform_0(%arg0: i32) -> (i32, i32) {
    %c0_i32 = arith.constant 0 : i32
    %c0_i32_0 = arith.constant 0 : i32
    return %arg0, %c0_i32 : i32, i32
  }
  func.func @transform_1(%arg0: i32) -> (i32, i32) {
    %c0_i32 = arith.constant 0 : i32
    %c0_i32_0 = arith.constant 0 : i32
    %c0_i32_1 = arith.constant 0 : i32
    return %c0_i32, %c0_i32_0 : i32, i32
  }
  func.func @transform_2(%arg0: i32) -> (i32, i32) {
    %c0_i32 = arith.constant 0 : i32
    %c0_i32_0 = arith.constant 0 : i32
    %c0_i32_1 = arith.constant 0 : i32
    return %c0_i32, %c0_i32_0 : i32, i32
  }
  func.func @transform_3(%arg0: i32) -> (i32, i32) {
    %c0_i32 = arith.constant 0 : i32
    %c0_i32_0 = arith.constant 0 : i32
    %c0_i32_1 = arith.constant 0 : i32
    return %c0_i32, %c0_i32_0 : i32, i32
  }
  func.func @transform_4(%arg0: i32) -> (i32, i32) {
    %c0_i32 = arith.constant 0 : i32
    %c0_i32_0 = arith.constant 0 : i32
    %c0_i32_1 = arith.constant 0 : i32
    return %c0_i32, %c0_i32_0 : i32, i32
  }
  func.func @transform_5(%arg0: i32) -> (i32, i32) {
    %c0_i32 = arith.constant 0 : i32
    %c0_i32_0 = arith.constant 0 : i32
    return %c0_i32, %arg0 : i32, i32
  }
}

</mosaic_0001>

<llo_original>
// kernel: winenet_forward.1
$region0: #{winenet_forward.1}
  #allocation0 [shape = 'u32[]', space=smem, size = 0x4, offset = 0x4, fixed_abs, tag = 'smem constant byte address 0x4 - core index']
  #allocation1 [shape = 'u32[144,128]{1,0:T(1,128)}', space=vmem, size = 0x12000, scoped, tag = 'internal scratch']
  %s0 = inlined_call_operand.vmem [shape: f32[8,13], index: 0, kind: input, shape index: {}]
  %s1 = inlined_call_operand.vmem [shape: f32[32,13], index: 1, kind: input, shape index: {}]
  %s2 = inlined_call_operand.vmem [shape: f32[32,1], index: 2, kind: input, shape index: {}]
  %s3 = inlined_call_operand.vmem [shape: f32[3,32], index: 3, kind: input, shape index: {}]
  %s4 = inlined_call_operand.vmem [shape: f32[3,1], index: 4, kind: input, shape index: {}]
  %s5 = inlined_call_operand.hbm [shape: f32[3,8], index: 5, kind: output, shape index: {}]
  %s6 = sld [smem:[#allocation0]]
  $region30: #{winenet_forward.1} parent=0
    _
  %s8 = ssub.s32 1, %s6
  %s9 = scalar_select 0, %s8, %s6
  $region1: #{winenet_forward.1} parent=0
    #allocation2 [shape = 'u8[2048]{0}', space=vmem, size = 0x800, scoped, tag = 'output window, operand 0, single buffered']
    #allocation3 [shape = 's32[1]{0}', space=sflag, size = 0x4, scoped, tag = 'scoped memory for winenet_forward.1']
    %10 = vsyncpa [#allocation3], 0
    // Predicated region
    $region2: #{winenet_forward.1} parent=1 // pred_check
      _
    $region3: #{winenet_forward.1} parent=1 // pred_check_branch
      %12 = sbr.rel (0) target = $region5
    $region4: #{winenet_forward.1} parent=1 // pred_region
      _
    $region5: #{winenet_forward.1} parent=1 // pred_fallthru
      _
    // Predicated region
    $region6: #{winenet_forward.1} parent=1 // pred_check
      _
    $region7: #{winenet_forward.1} parent=1 // pred_check_branch
      %14 = sbr.rel (0) target = $region9
    $region8: #{winenet_forward.1} parent=1 // pred_region
      _
    $region9: #{winenet_forward.1} parent=1 // pred_fallthru
      _
    // Predicated region
    $region10: #{winenet_forward.1} parent=1 // pred_check
      _
    $region11: #{winenet_forward.1} parent=1 // pred_check_branch
      %16 = sbr.rel (0) target = $region13
    $region12: #{winenet_forward.1} parent=1 // pred_region
      _
    $region13: #{winenet_forward.1} parent=1 // pred_fallthru
      _
    // Predicated region
    $region14: #{winenet_forward.1} parent=1 // pred_check
      _
    $region15: #{winenet_forward.1} parent=1 // pred_check_branch
      %18 = sbr.rel (0) target = $region17
    $region16: #{winenet_forward.1} parent=1 // pred_region
      _
    $region17: #{winenet_forward.1} parent=1 // pred_fallthru
      _
    // Predicated region
    $region18: #{winenet_forward.1} parent=1 // pred_check
      _
    $region19: #{winenet_forward.1} parent=1 // pred_check_branch
      %20 = sbr.rel (0) target = $region21
    $region20: #{winenet_forward.1} parent=1 // pred_region
      _
    $region21: #{winenet_forward.1} parent=1 // pred_fallthru
      _
    %v21 = vld [vmem:[%s1] sm:$0xff]
    %v22 = vld [vmem:[%s1 + $0x8] sm:$0xff]
    %v23 = vld [vmem:[%s1 + $0x10] sm:$0xff]
    %v24 = vld [vmem:[%s1 + $0x18] sm:$0xff]
    %v25 = vld [vmem:[%s0] sm:$0xff]
    %v26 = vld [vmem:[%s2] sm:$0xff]
    %v27 = vld [vmem:[%s2 + $0x8] sm:$0xff]
    %v28 = vld [vmem:[%s2 + $0x10] sm:$0xff]
    %v29 = vld [vmem:[%s2 + $0x18] sm:$0xff]
    %31 = vset.pattern.permute.xlu0 0
    %32 = vperm.xlu0 %31, %v26
    %v33 = vpop.permute.xlu0 %32
    %36 = vset.pattern.permute.xlu0 0
    %37 = vperm.xlu0 %36, %v27
    %v38 = vpop.permute.xlu0 %37
    %41 = vset.pattern.permute.xlu0 0
    %42 = vperm.xlu0 %41, %v28
    %v43 = vpop.permute.xlu0 %42
    %46 = vset.pattern.permute.xlu0 0
    %47 = vperm.xlu0 %46, %v29
    %v48 = vpop.permute.xlu0 %47
    %vm50 = vcmask 105472
    %v52 = vsel %vm50, %v21, 0
    %v55 = vsel %vm50, %v22, 0
    %v58 = vsel %vm50, %v23, 0
    %v61 = vsel %vm50, %v24, 0
    %v64 = vsel %vm50, %v25, 0
    %66 = vmatprep.subr.mxu0 0.0
    %67 = vmatpush1.xpose.msra.mxu0 %v64
    %68 = vmatprep.subr.mxu0 0.0
    %69 = vmatpush1.xpose.msra.mxu0 0.0
    %70 = vmatprep.subr.mxu0 0.0
    %71 = vmatpush1.xpose.msra.mxu0 0.0
    %72 = vmatprep.subr.mxu0 0.0
    %73 = vmatpush1.xpose.msra.mxu0 0.0
    %74 = vmatprep.subr.mxu0 0.0
    %75 = vmatpush1.xpose.msra.mxu0 0.0
    %76 = vmatprep.subr.mxu0 0.0
    %77 = vmatpush1.xpose.msra.mxu0 0.0
    %78 = vmatprep.subr.mxu0 0.0
    %79 = vmatpush1.xpose.msra.mxu0 0.0
    %80 = vmatprep.subr.mxu0 0.0
    %81 = vmatpush1.xpose.msra.mxu0 0.0
    %82 = vmatprep.subr.mxu0 0.0
    %83 = vmatpush1.xpose.msra.mxu0 0.0
    %84 = vmatprep.subr.mxu0 0.0
    %85 = vmatpush1.xpose.msra.mxu0 0.0
    %86 = vmatprep.subr.mxu0 0.0
    %87 = vmatpush1.xpose.msra.mxu0 0.0
    %88 = vmatprep.subr.mxu0 0.0
    %89 = vmatpush1.xpose.msra.mxu0 0.0
    %90 = vmatprep.subr.mxu0 0.0
    %91 = vmatpush1.xpose.msra.mxu0 0.0
    %92 = vmatprep.subr.mxu0 0.0
    %93 = vmatpush1.xpose.msra.mxu0 0.0
    %94 = vmatprep.subr.mxu0 0.0
    %95 = vmatpush1.xpose.msra.mxu0 0.0
    %96 = vmatprep.subr.mxu0 0.0
    %97 = vmatpush1.xpose.msra.mxu0 0.0
    %98 = vmatprep.subr.mxu0 0.0
    %99 = vmatpush1.xpose.msra.mxu0 0.0
    %100 = vmatprep.subr.mxu0 0.0
    %101 = vmatpush1.xpose.msra.mxu0 0.0
    %102 = vmatprep.subr.mxu0 0.0
    %103 = vmatpush1.xpose.msra.mxu0 0.0
    %104 = vmatprep.subr.mxu0 0.0
    %105 = vmatpush1.xpose.msra.mxu0 0.0
    %106 = vmatprep.subr.mxu0 0.0
    %107 = vmatpush1.xpose.msra.mxu0 0.0
    %108 = vmatprep.subr.mxu0 0.0
    %109 = vmatpush1.xpose.msra.mxu0 0.0
    %110 = vmatprep.subr.mxu0 0.0
    %111 = vmatpush1.xpose.msra.mxu0 0.0
    %112 = vmatprep.subr.mxu0 0.0
    %113 = vmatpush1.xpose.msra.mxu0 0.0
    %114 = vmatprep.subr.mxu0 0.0
    %115 = vmatpush1.xpose.msra.mxu0 0.0
    %116 = vmatprep.subr.mxu0 0.0
    %117 = vmatpush1.xpose.msra.mxu0 0.0
    %118 = vmatprep.subr.mxu0 0.0
    %119 = vmatpush1.xpose.msra.mxu0 0.0
    %120 = vmatprep.subr.mxu0 0.0
    %121 = vmatpush1.xpose.msra.mxu0 0.0
    %122 = vmatprep.subr.mxu0 0.0
    %123 = vmatpush1.xpose.msra.mxu0 0.0
    %124 = vmatprep.subr.mxu0 0.0
    %125 = vmatpush1.xpose.msra.mxu0 0.0
    %126 = vmatprep.subr.mxu0 0.0
    %127 = vmatpush1.xpose.msra.mxu0 0.0
    %128 = vmatprep.subr.mxu0 0.0
    %129 = vmatpush1.xpose.msra.mxu0 0.0
    %130 = vmatprep.mubr.f32.mxu0 0.0
    %131 = vmatmul.mubr.f32.gmra.mrb[0].mxu0 %v52
    %v132 = vpop.f32.mrb[0].mxu0
    %v133 = vadd.f32 %v33, %v132
    %v134 = vpop.f32.mrb[0].mxu0
    %135 = vmatprep.mubr.f32.mxu0 0.0
    %136 = vmatmul.mubr.f32.gmra.mrb[0].mxu0 %v55
    %v137 = vpop.f32.mrb[0].mxu0
    %v138 = vadd.f32 %v38, %v137
    %v139 = vpop.f32.mrb[0].mxu0
    %140 = vmatprep.mubr.f32.mxu0 0.0
    %141 = vmatmul.mubr.f32.gmra.mrb[0].mxu0 %v58
    %v142 = vpop.f32.mrb[0].mxu0
    %v143 = vadd.f32 %v43, %v142
    %v144 = vpop.f32.mrb[0].mxu0
    %145 = vmatprep.mubr.f32.mxu0 0.0
    %146 = vmatmul.mubr.f32.gmra.mrb[0].mxu0 %v61
    %v147 = vpop.f32.mrb[0].mxu0
    %v148 = vadd.f32 %v48, %v147
    %v149 = vpop.f32.mrb[0].mxu0
    %150 = vdwg.mxu0
    %v151 = vxor.u32 %v133, 2147483648
    %v152 = vxor.u32 %v138, 2147483648
    %v153 = vxor.u32 %v143, 2147483648
    %v154 = vxor.u32 %v148, 2147483648
    %v155 = vmul.f32 %v151, 1.442695
    %v156 = vpow.pop %v155
    %v157 = vmul.f32 %v152, 1.442695
    %v158 = vpow.pop %v157
    %v159 = vmul.f32 %v153, 1.442695
    %v160 = vpow.pop %v159
    %v161 = vmul.f32 %v154, 1.442695
    %v162 = vpow.pop %v161
    %v163 = vadd.f32 %v156, 1.0
    %v164 = vadd.f32 %v158, 1.0
    %v165 = vadd.f32 %v160, 1.0
    %v166 = vadd.f32 %v162, 1.0
    %v167 = vrcp.pop %v163
    %v168 = vmul.f32 1.0, %v167
    %v169 = vrcp.pop %v164
    %v170 = vmul.f32 1.0, %v169
    %v171 = vrcp.pop %v165
    %v172 = vmul.f32 1.0, %v171
    %v173 = vrcp.pop %v166
    %v174 = vmul.f32 1.0, %v173
    %v175 = vld [vmem:[%s3] sm:$0x7]
    %v176 = vld [vmem:[%s4] sm:$0x7]
    %178 = vset.pattern.permute.xlu0 0
    %179 = vperm.xlu0 %178, %v176
    %v180 = vpop.permute.xlu0 %179
    %vm182 = vcmask 261120
    %v184 = vsel %vm182, %v175, 0
    %186 = vmatprep.subr.mxu0 0.0
    %187 = vmatpush1.msra.mxu0 %v168
    %188 = vmatprep.subr.mxu0 0.0
    %189 = vmatpush1.msra.mxu0 %v170
    %190 = vmatprep.subr.mxu0 0.0
    %191 = vmatpush1.msra.mxu0 %v172
    %192 = vmatprep.subr.mxu0 0.0
    %193 = vmatpush1.msra.mxu0 %v174
    %194 = vmatprep.subr.mxu0 0.0
    %195 = vmatpush1.msra.mxu0 0.0
    %196 = vmatprep.subr.mxu0 0.0
    %197 = vmatpush1.msra.mxu0 0.0
    %198 = vmatprep.subr.mxu0 0.0
    %199 = vmatpush1.msra.mxu0 0.0
    %200 = vmatprep.subr.mxu0 0.0
    %201 = vmatpush1.msra.mxu0 0.0
    %202 = vmatprep.subr.mxu0 0.0
    %203 = vmatpush1.msra.mxu0 0.0
    %204 = vmatprep.subr.mxu0 0.0
    %205 = vmatpush1.msra.mxu0 0.0
    %206 = vmatprep.subr.mxu0 0.0
    %207 = vmatpush1.msra.mxu0 0.0
    %208 = vmatprep.subr.mxu0 0.0
    %209 = vmatpush1.msra.mxu0 0.0
    %210 = vmatprep.subr.mxu0 0.0
    %211 = vmatpush1.msra.mxu0 0.0
    %212 = vmatprep.subr.mxu0 0.0
    %213 = vmatpush1.msra.mxu0 0.0
    %214 = vmatprep.subr.mxu0 0.0
    %215 = vmatpush1.msra.mxu0 0.0
    %216 = vmatprep.subr.mxu0 0.0
    %217 = vmatpush1.msra.mxu0 0.0
    %218 = vmatprep.subr.mxu0 0.0
    %219 = vmatpush1.msra.mxu0 0.0
    %220 = vmatprep.subr.mxu0 0.0
    %221 = vmatpush1.msra.mxu0 0.0
    %222 = vmatprep.subr.mxu0 0.0
    %223 = vmatpush1.msra.mxu0 0.0
    %224 = vmatprep.subr.mxu0 0.0
    %225 = vmatpush1.msra.mxu0 0.0
    %226 = vmatprep.subr.mxu0 0.0
    %227 = vmatpush1.msra.mxu0 0.0
    %228 = vmatprep.subr.mxu0 0.0
    %229 = vmatpush1.msra.mxu0 0.0
    %230 = vmatprep.subr.mxu0 0.0
    %231 = vmatpush1.msra.mxu0 0.0
    %232 = vmatprep.subr.mxu0 0.0
    %233 = vmatpush1.msra.mxu0 0.0
    %234 = vmatprep.subr.mxu0 0.0
    %235 = vmatpush1.msra.mxu0 0.0
    %236 = vmatprep.subr.mxu0 0.0
    %237 = vmatpush1.msra.mxu0 0.0
    %238 = vmatprep.subr.mxu0 0.0
    %239 = vmatpush1.msra.mxu0 0.0
    %240 = vmatprep.subr.mxu0 0.0
    %241 = vmatpush1.msra.mxu0 0.0
    %242 = vmatprep.subr.mxu0 0.0
    %243 = vmatpush1.msra.mxu0 0.0
    %244 = vmatprep.subr.mxu0 0.0
    %245 = vmatpush1.msra.mxu0 0.0
    %246 = vmatprep.subr.mxu0 0.0
    %247 = vmatpush1.msra.mxu0 0.0
    %248 = vmatprep.subr.mxu0 0.0
    %249 = vmatpush1.msra.mxu0 0.0
    %250 = vmatprep.mubr.f32.mxu0 0.0
    %251 = vmatmul.mubr.f32.gmra.mrb[0].mxu0 %v184
    %v252 = vpop.f32.mrb[0].mxu0
    %v253 = vadd.f32 %v180, %v252
    %v254 = vpop.f32.mrb[0].mxu0
    %255 = vdwg.mxu0
    %vm256 = vcmask 59392
    %257 = vst.msk [vmem:[#allocation2] sm:$0x7] %vm256, %v253
    // Predicated region
    $region22: #{winenet_forward.1} parent=1 // pred_check
      _
    $region23: #{winenet_forward.1} parent=1 // pred_check_branch
      %259 = sbr.rel (0) target = $region25
    $region24: #{winenet_forward.1} parent=1 // pred_region
      %s261 = ssub.s32 64, 64
      %262 = vsyncadd [#allocation3], %s261
      %s264 = sshll.u32 [#allocation2], 4
      %s265 = int_to_ptr.vmem [resolvable:$true] %s264
      %267 = dma.vmem_to_hbm [thread:$0]  %s265, 64, %s5, [#allocation3]
    $region25: #{winenet_forward.1} parent=1 // pred_fallthru
      _
    // Predicated region
    $region26: #{winenet_forward.1} parent=1 // pred_check
      _
    $region27: #{winenet_forward.1} parent=1 // pred_check_branch
      %269 = sbr.rel (0) target = $region29
    $region28: #{winenet_forward.1} parent=1 // pred_region
      %270 = dma.done [#allocation3], 64
    $region29: #{winenet_forward.1} parent=1 // pred_fallthru
      _
    %271 = vsyncpa [#allocation3], 1

</llo_original>
